<compile_context>
chip_gen: v5e
topology: v5e:2x2
jax: 0.10.0
libtpu: 0.0.40
codegen_flags: <defaults>
</compile_context>

<pallas_src>
import functools
import math

import jax
import jax.numpy as jnp
from jax.experimental import pallas as pl
from jax.experimental.pallas import tpu as pltpu


# ---------------------------- in-kernel helpers ----------------------------

def _ln(x, g, b, eps):
    # LayerNorm in f32 (BERT eps = 1e-12).
    mean = jnp.mean(x, axis=-1, keepdims=True)
    var = jnp.mean(jnp.square(x - mean), axis=-1, keepdims=True)
    return (x - mean) * jax.lax.rsqrt(var + eps) * g + b


# ---------------------------- fused encoder layer ----------------------------

def _encoder_layer_kernel(x_ref, m_ref,
                          wqkv_ref, bqkv_ref, wo_ref, bo_ref,
                          ln1g_ref, ln1b_ref,
                          w1_ref, b1_ref, w2_ref, b2_ref,
                          ln2g_ref, ln2b_ref,
                          o_ref, *, nH, Dh, S, H, eps, scale):
    x = x_ref[...]                                    # (S, H) f32 residual stream
    x_bf = x.astype(jnp.bfloat16)

    # --- fused QKV projection: one (S,H) @ (H,3H) matmul on the MXU ---
    qkv = jnp.dot(x_bf, wqkv_ref[...], preferred_element_type=jnp.float32)
    qkv = qkv + bqkv_ref[...]                         # (S, 3H)
    q = qkv[:, 0 * H:1 * H]
    k = qkv[:, 1 * H:2 * H]
    v = qkv[:, 2 * H:3 * H]

    # --- fold heads onto the sublane axis: (nH*S, Dh) ---
    def fold(t):
        return jnp.concatenate([t[:, h * Dh:(h + 1) * Dh] for h in range(nH)],
                               axis=0)
    q_f = fold(q).astype(jnp.bfloat16)
    k_f = fold(k).astype(jnp.bfloat16)
    v_f = fold(v).astype(jnp.bfloat16)

    L = nH * S
    # one dense (L, L) score matmul; cross-head blocks removed by masking.
    s = jax.lax.dot_general(q_f, k_f, (((1,), (1,)), ((), ())),
                            preferred_element_type=jnp.float32)   # (L, L)
    s = s * scale
    row_head = jax.lax.broadcasted_iota(jnp.int32, (L, L), 0) // S
    col_head = jax.lax.broadcasted_iota(jnp.int32, (L, L), 1) // S
    s = jnp.where(row_head == col_head, s, -1e9)      # block-diagonal head mask
    s = s + m_ref[...]                                # (1, L) additive padding mask

    # stable softmax; reciprocal on the EUP slot.
    s = s - jnp.max(s, axis=-1, keepdims=True)
    p = jnp.exp(s)
    p = p * pl.reciprocal(jnp.sum(p, axis=-1, keepdims=True), approx=True)

    ctx_f = jnp.dot(p.astype(jnp.bfloat16), v_f,
                    preferred_element_type=jnp.float32)           # (L, Dh)
    # unfold heads back onto the lane axis: (S, H)
    ctx = jnp.concatenate([ctx_f[h * S:(h + 1) * S, :] for h in range(nH)],
                          axis=1)

    # --- attention output projection + residual + LN1 (fused epilogue) ---
    attn_out = jnp.dot(ctx.astype(jnp.bfloat16), wo_ref[...],
                       preferred_element_type=jnp.float32) + bo_ref[...]
    x1 = _ln(x + attn_out, ln1g_ref[...], ln1b_ref[...], eps)

    # --- FFN + residual + LN2 (all in VMEM) ---
    # TODO(synk): HF BERT uses exact (erf) GELU; tanh approximation used here.
    h1 = jnp.dot(x1.astype(jnp.bfloat16), w1_ref[...],
                 preferred_element_type=jnp.float32) + b1_ref[...]
    h1 = jax.nn.gelu(h1, approximate=True)
    h2 = jnp.dot(h1.astype(jnp.bfloat16), w2_ref[...],
                 preferred_element_type=jnp.float32) + b2_ref[...]
    o_ref[...] = _ln(x1 + h2, ln2g_ref[...], ln2b_ref[...], eps)


def encoder_layer(x, add_mask, lp, *, heads, eps=1e-12):
    """One fused BERT encoder layer.  x: (B,S,H) f32, add_mask: (B,1,heads*S) f32."""
    B, S, H = x.shape
    Dh = H // heads
    I = lp["w1"].shape[1]
    scale = 1.0 / math.sqrt(Dh)

    def full(shape):
        return pl.BlockSpec(shape, lambda b: (0,) * len(shape))

    return pl.pallas_call(
        functools.partial(_encoder_layer_kernel, nH=heads, Dh=Dh, S=S, H=H,
                          eps=eps, scale=scale),
        out_shape=jax.ShapeDtypeStruct((B, S, H), jnp.float32),
        grid=(B,),
        in_specs=[
            pl.BlockSpec((None, S, H), lambda b: (b, 0, 0)),            # x
            pl.BlockSpec((None, 1, heads * S), lambda b: (b, 0, 0)),    # mask
            full((H, 3 * H)), full((1, 3 * H)),                         # wqkv, bqkv
            full((H, H)), full((1, H)),                                 # wo, bo
            full((1, H)), full((1, H)),                                 # ln1 g,b
            full((H, I)), full((1, I)),                                 # w1, b1
            full((I, H)), full((1, H)),                                 # w2, b2
            full((1, H)), full((1, H)),                                 # ln2 g,b
        ],
        out_specs=pl.BlockSpec((None, S, H), lambda b: (b, 0, 0)),
        compiler_params=pltpu.CompilerParams(
            dimension_semantics=("parallel",)),
    )(x, add_mask, lp["wqkv"], lp["bqkv"], lp["wo"], lp["bo"],
      lp["ln1_g"], lp["ln1_b"], lp["w1"], lp["b1"], lp["w2"], lp["b2"],
      lp["ln2_g"], lp["ln2_b"])


# ---------------------------- embedding LayerNorm ----------------------------

def _layernorm_kernel(x_ref, g_ref, b_ref, o_ref, *, eps):
    o_ref[...] = _ln(x_ref[...], g_ref[...], b_ref[...], eps)


def layernorm(x, gamma, beta, eps=1e-12, block_rows=512):
    M, H = x.shape
    tm = M if M <= block_rows else block_rows   # row-tiled when M scales up
    return pl.pallas_call(
        functools.partial(_layernorm_kernel, eps=eps),
        out_shape=jax.ShapeDtypeStruct((M, H), jnp.float32),
        grid=(pl.cdiv(M, tm),),
        in_specs=[pl.BlockSpec((tm, H), lambda i: (i, 0)),
                  pl.BlockSpec((1, H), lambda i: (0, 0)),
                  pl.BlockSpec((1, H), lambda i: (0, 0))],
        out_specs=pl.BlockSpec((tm, H), lambda i: (i, 0)),
        compiler_params=pltpu.CompilerParams(
            dimension_semantics=("parallel",)),
    )(x, gamma, beta)


# ---------------------------- pooler + classifier head ----------------------------

def _pooler_head_kernel(cls_ref, wp_ref, bp_ref, wout_ref, bout_ref, o_ref):
    pooled = jnp.dot(cls_ref[...].astype(jnp.bfloat16), wp_ref[...],
                     preferred_element_type=jnp.float32) + bp_ref[...]
    pooled = jnp.tanh(pooled)
    # nn.Dropout(p=0.3) is identity at inference time.
    o_ref[...] = jnp.dot(pooled.astype(jnp.bfloat16), wout_ref[...],
                         preferred_element_type=jnp.float32) + bout_ref[...]


def pooler_and_classifier(cls, wp, bp, wout_pad, bout_pad):
    B, H = cls.shape
    Np = wout_pad.shape[1]   # lane-dense padded class dim (128)
    return pl.pallas_call(
        _pooler_head_kernel,
        out_shape=jax.ShapeDtypeStruct((B, Np), jnp.float32),
        grid=(1,),
        in_specs=[pl.BlockSpec((B, H), lambda i: (0, 0)),
                  pl.BlockSpec((H, H), lambda i: (0, 0)),
                  pl.BlockSpec((1, H), lambda i: (0, 0)),
                  pl.BlockSpec((H, Np), lambda i: (0, 0)),
                  pl.BlockSpec((1, Np), lambda i: (0, 0))],
        out_specs=pl.BlockSpec((B, Np), lambda i: (0, 0)),
    )(cls, wp, bp, wout_pad, bout_pad)


# ---------------------------- params & forward ----------------------------

def init_params(key, cfg):
    H, I = cfg["hidden"], cfg["intermediate"]
    NP = 128                                   # padded (lane-dense) class dim
    n_cls = cfg["n_classes"]

    def normal(k, shape, std=0.02, dtype=jnp.bfloat16):
        return (std * jax.random.normal(k, shape)).astype(dtype)

    keys = iter(jax.random.split(key, 8 + 5 * cfg["layers"]))

    w_out = normal(next(keys), (H, n_cls))
    w_out_pad = jnp.zeros((H, NP), jnp.bfloat16).at[:, :n_cls].set(w_out)

    params = {
        "word_emb": normal(next(keys), (cfg["vocab"], H), dtype=jnp.float32),
        "pos_emb": normal(next(keys), (cfg["max_pos"], H), dtype=jnp.float32),
        "type_emb": normal(next(keys), (cfg["type_vocab"], H), dtype=jnp.float32),
        "emb_ln_g": jnp.ones((1, H), jnp.float32),
        "emb_ln_b": jnp.zeros((1, H), jnp.float32),
        "wp": normal(next(keys), (H, H)),
        "bp": jnp.zeros((1, H), jnp.float32),
        "w_out_pad": w_out_pad,
        "b_out_pad": jnp.zeros((1, NP), jnp.float32),
        "layers": [],
    }
    for _ in range(cfg["layers"]):
        params["layers"].append({
            # Q|K|V fused into a single (H, 3H) bf16 weight.
            "wqkv": normal(next(keys), (H, 3 * H)),
            "bqkv": jnp.zeros((1, 3 * H), jnp.float32),
            "wo": normal(next(keys), (H, H)),
            "bo": jnp.zeros((1, H), jnp.float32),
            "ln1_g": jnp.ones((1, H), jnp.float32),
            "ln1_b": jnp.zeros((1, H), jnp.float32),
            "w1": normal(next(keys), (H, I)),
            "b1": jnp.zeros((1, I), jnp.float32),
            "w2": normal(next(keys), (I, H)),
            "b2": jnp.zeros((1, H), jnp.float32),
            "ln2_g": jnp.ones((1, H), jnp.float32),
            "ln2_b": jnp.zeros((1, H), jnp.float32),
        })
    return params


def sentiment_classifier_forward(params, input_ids, attention_mask, cfg):
    B, S = input_ids.shape
    H, nH = cfg["hidden"], cfg["heads"]

    # ---- BERT embeddings (table gather is plain-JAX glue) ----
    # TODO(synk): embedding gathers could be a manual-DMA gather kernel; kept as XLA glue.
    x = (params["word_emb"][input_ids]
         + params["pos_emb"][jnp.arange(S)][None, :, :]
         + params["type_emb"][0][None, None, :])            # token_type_ids = 0
    x = layernorm(x.reshape(B * S, H), params["emb_ln_g"], params["emb_ln_b"])
    x = x.reshape(B, S, H)

    # Additive padding mask, pre-tiled across heads for the folded score layout.
    add_mask = ((1.0 - attention_mask.astype(jnp.float32)) * -10000.0
                ).reshape(B, 1, S)
    add_mask = jnp.tile(add_mask, (1, 1, nH))                # (B, 1, nH*S)

    # ---- fused transformer encoder layers (one pallas_call each) ----
    for lp in params["layers"]:
        x = encoder_layer(x, add_mask, lp, heads=nH)

    # ---- pooler (tanh) + dropout(identity) + classifier, fused; lane-dense output ----
    cls = x[:, 0, :]                                         # (B, H)
    logits_pad = pooler_and_classifier(cls, params["wp"], params["bp"],
                                       params["w_out_pad"], params["b_out_pad"])
    return logits_pad[:, :cfg["n_classes"]]


if __name__ == "__main__":
    cfg = dict(vocab=64, hidden=128, heads=4, layers=2, intermediate=512,
               max_pos=16, type_vocab=2, n_classes=3)
    B, S = 2, 8

    root = jax.random.PRNGKey(0)
    k_params, k_ids = jax.random.split(root)
    params = init_params(k_params, cfg)

    input_ids = jax.random.randint(k_ids, (B, S), 0, cfg["vocab"], dtype=jnp.int32)
    attention_mask = jnp.array([[1, 1, 1, 1, 1, 1, 1, 1],
                                [1, 1, 1, 1, 1, 1, 0, 0]], dtype=jnp.int32)

    logits = sentiment_classifier_forward(params, input_ids, attention_mask, cfg)
    logits = jax.block_until_ready(logits)
    assert logits.shape == (B, cfg["n_classes"])
    assert bool(jnp.all(jnp.isfinite(logits)))
    print("KERNEL_OK")
</pallas_src>

<mosaic_0001>
module attributes {stable_mosaic.version = 11 : i64} {
  func.func @_layernorm_kernel(%arg0: i32, %arg1: memref<16x128xf32, #tpu.memory_space<vmem>>, %arg2: memref<1x128xf32, #tpu.memory_space<vmem>>, %arg3: memref<1x128xf32, #tpu.memory_space<vmem>>, %arg4: memref<16x128xf32, #tpu.memory_space<vmem>>) attributes {dimension_semantics = [#tpu.dimension_semantics<parallel>], iteration_bounds = array<i64: 1>, scalar_prefetch = 0 : i64, scratch_operands = 0 : i64, tpu.core_type = #tpu.core_type<tc>, window_params = [{transform_indices = @transform_0, window_bounds = array<i64: 16, 128>}, {pipeline_mode = #tpu.pipeline_mode<synchronous>, transform_indices = @transform_1, window_bounds = array<i64: 1, 128>}, {pipeline_mode = #tpu.pipeline_mode<synchronous>, transform_indices = @transform_2, window_bounds = array<i64: 1, 128>}, {transform_indices = @transform_3, window_bounds = array<i64: 16, 128>}]} {
    %c0 = arith.constant 0 : index
    %c0_0 = arith.constant 0 : index
    %0 = vector.load %arg1[%c0, %c0_0] : memref<16x128xf32, #tpu.memory_space<vmem>>, vector<16x128xf32>
    %c0_1 = arith.constant 0 : index
    %c0_2 = arith.constant 0 : index
    %1 = vector.load %arg2[%c0_1, %c0_2] : memref<1x128xf32, #tpu.memory_space<vmem>>, vector<1x128xf32>
    %c0_3 = arith.constant 0 : index
    %c0_4 = arith.constant 0 : index
    %2 = vector.load %arg3[%c0_3, %c0_4] : memref<1x128xf32, #tpu.memory_space<vmem>>, vector<1x128xf32>
    %cst = arith.constant dense<0.000000e+00> : vector<16xf32>
    %3 = vector.multi_reduction <add>, %0, %cst [1] : vector<16x128xf32> to vector<16xf32>
    %4 = vector.shape_cast %3 : vector<16xf32> to vector<16x1xf32>
    %cst_5 = arith.constant 1.280000e+02 : f32
    %5 = vector.broadcast %cst_5 : f32 to vector<16x1xf32>
    %6 = arith.divf %4, %5 : vector<16x1xf32>
    %7 = vector.broadcast %6 : vector<16x1xf32> to vector<16x128xf32>
    %8 = arith.subf %0, %7 : vector<16x128xf32>
    %9 = arith.mulf %8, %8 : vector<16x128xf32>
    %cst_6 = arith.constant dense<0.000000e+00> : vector<16xf32>
    %10 = vector.multi_reduction <add>, %9, %cst_6 [1] : vector<16x128xf32> to vector<16xf32>
    %11 = vector.shape_cast %10 : vector<16xf32> to vector<16x1xf32>
    %cst_7 = arith.constant 1.280000e+02 : f32
    %12 = vector.broadcast %cst_7 : f32 to vector<16x1xf32>
    %13 = arith.divf %11, %12 : vector<16x1xf32>
    %14 = vector.broadcast %6 : vector<16x1xf32> to vector<16x128xf32>
    %15 = arith.subf %0, %14 : vector<16x128xf32>
    %cst_8 = arith.constant 9.99999996E-13 : f32
    %16 = vector.broadcast %cst_8 : f32 to vector<16x1xf32>
    %17 = arith.addf %13, %16 : vector<16x1xf32>
    %18 = math.rsqrt %17 : vector<16x1xf32>
    %19 = vector.broadcast %18 : vector<16x1xf32> to vector<16x128xf32>
    %20 = arith.mulf %15, %19 : vector<16x128xf32>
    %21 = vector.broadcast %1 : vector<1x128xf32> to vector<16x128xf32>
    %22 = arith.mulf %20, %21 : vector<16x128xf32>
    %23 = vector.broadcast %2 : vector<1x128xf32> to vector<16x128xf32>
    %24 = arith.addf %22, %23 : vector<16x128xf32>
    %c0_9 = arith.constant 0 : index
    %c0_10 = arith.constant 0 : index
    %25 = vector.load %arg4[%c0_9, %c0_10] : memref<16x128xf32, #tpu.memory_space<vmem>>, vector<16x128xf32>
    tpu.vector_store %arg4[%c0_9, %c0_10], %24 {strides = array<i32>} : memref<16x128xf32, #tpu.memory_space<vmem>>, vector<16x128xf32>,
    return
  }
  func.func @transform_0(%arg0: i32) -> (i32, i32) {
    %c0_i32 = arith.constant 0 : i32
    %c0_i32_0 = arith.constant 0 : i32
    return %arg0, %c0_i32 : i32, i32
  }
  func.func @transform_1(%arg0: i32) -> (i32, i32) {
    %c0_i32 = arith.constant 0 : i32
    %c0_i32_0 = arith.constant 0 : i32
    %c0_i32_1 = arith.constant 0 : i32
    return %c0_i32, %c0_i32_0 : i32, i32
  }
  func.func @transform_2(%arg0: i32) -> (i32, i32) {
    %c0_i32 = arith.constant 0 : i32
    %c0_i32_0 = arith.constant 0 : i32
    %c0_i32_1 = arith.constant 0 : i32
    return %c0_i32, %c0_i32_0 : i32, i32
  }
  func.func @transform_3(%arg0: i32) -> (i32, i32) {
    %c0_i32 = arith.constant 0 : i32
    %c0_i32_0 = arith.constant 0 : i32
    return %arg0, %c0_i32 : i32, i32
  }
}

</mosaic_0001>

<llo_original>
// kernel: tpu_custom_call.1
$region0: #{tpu_custom_call.1}
  #allocation0 [shape = 'u32[]', space=smem, size = 0x4, offset = 0x4, fixed_abs, tag = 'smem constant byte address 0x4 - core index']
  #allocation1 [shape = 'u32[72,128]{1,0:T(1,128)}', space=vmem, size = 0x9000, scoped, tag = 'internal scratch']
  %s0 = inlined_call_operand.hbm [shape: f32[16,128], index: 0, kind: input, shape index: {}]
  %s1 = inlined_call_operand.hbm [shape: f32[1,128], index: 1, kind: input, shape index: {}]
  %s2 = inlined_call_operand.vmem [shape: f32[1,128], index: 2, kind: input, shape index: {}]
  %s3 = inlined_call_operand.hbm [shape: f32[16,128], index: 3, kind: output, shape index: {}]
  %s4 = sld [smem:[#allocation0]]
  $region30: #{tpu_custom_call.1} parent=0
    _
  %s6 = ssub.s32 1, %s4
  %s7 = scalar_select 0, %s6, %s4
  $region1: #{tpu_custom_call.1} parent=0
    #allocation2 [shape = 'u8[8192]{0}', space=vmem, size = 0x2000, scoped, tag = 'input window, operand 0, single buffered']
    #allocation3 [shape = 's32[1]{0}', space=sflag, size = 0x4, scoped, tag = 'scoped memory for tpu_custom_call.1']
    #allocation4 [shape = 's32[1]{0}', space=sflag, size = 0x4, scoped, tag = 'scoped memory for tpu_custom_call.1']
    #allocation5 [shape = 'u8[512]{0}', space=vmem, size = 0x400, scoped, tag = 'input window, operand 1, single buffered']
    #allocation6 [shape = 's32[1]{0}', space=sflag, size = 0x4, scoped, tag = 'scoped memory for tpu_custom_call.1']
    #allocation7 [shape = 'u8[8192]{0}', space=vmem, size = 0x2000, scoped, tag = 'output window, operand 0, single buffered']
    %8 = vsyncpa [#allocation3], 0
    %9 = vsyncpa [#allocation6], 0
    %10 = vsyncpa [#allocation4], 0
    // Predicated region
    $region2: #{tpu_custom_call.1} parent=1 // pred_check
      _
    $region3: #{tpu_custom_call.1} parent=1 // pred_check_branch
      %12 = sbr.rel (0) target = $region5
    $region4: #{tpu_custom_call.1} parent=1 // pred_region
      %14 = vsyncadd [#allocation3], 0
      %s15 = sshll.u32 %s0, 4
      %s16 = int_to_ptr.hbm [resolvable:$true] %s15
      %s17 = sshll.u32 [#allocation2], 4
      %s18 = int_to_ptr.vmem [resolvable:$true] %s17
      %23 = dma.hbm_to_vmem [thread:$0]  %s16, 256, %s18, [#allocation3], 128, 128, 8
    $region5: #{tpu_custom_call.1} parent=1 // pred_fallthru
      _
    // Predicated region
    $region6: #{tpu_custom_call.1} parent=1 // pred_check
      _
    $region7: #{tpu_custom_call.1} parent=1 // pred_check_branch
      %25 = sbr.rel (0) target = $region9
    $region8: #{tpu_custom_call.1} parent=1 // pred_region
      %27 = vsyncadd [#allocation6], 0
      %s29 = sshll.u32 %s1, 4
      %s30 = int_to_ptr.hbm [resolvable:$true] %s29
      %s31 = sshll.u32 [#allocation5], 4
      %s32 = int_to_ptr.vmem [resolvable:$true] %s31
      %34 = dma.hbm_to_vmem [thread:$0]  %s30, 16, %s32, [#allocation6]
    $region9: #{tpu_custom_call.1} parent=1 // pred_fallthru
      _
    // Predicated region
    $region10: #{tpu_custom_call.1} parent=1 // pred_check
      _
    $region11: #{tpu_custom_call.1} parent=1 // pred_check_branch
      %36 = sbr.rel (0) target = $region13
    $region12: #{tpu_custom_call.1} parent=1 // pred_region
      _
    $region13: #{tpu_custom_call.1} parent=1 // pred_fallthru
      _
    // Predicated region
    $region14: #{tpu_custom_call.1} parent=1 // pred_check
      _
    $region15: #{tpu_custom_call.1} parent=1 // pred_check_branch
      %38 = sbr.rel (0) target = $region17
    $region16: #{tpu_custom_call.1} parent=1 // pred_region
      %40 = dma.done [#allocation3], 256
    $region17: #{tpu_custom_call.1} parent=1 // pred_fallthru
      _
    // Predicated region
    $region18: #{tpu_custom_call.1} parent=1 // pred_check
      _
    $region19: #{tpu_custom_call.1} parent=1 // pred_check_branch
      %42 = sbr.rel (0) target = $region21
    $region20: #{tpu_custom_call.1} parent=1 // pred_region
      %44 = dma.done [#allocation6], 16
    $region21: #{tpu_custom_call.1} parent=1 // pred_fallthru
      _
    %v45 = vld [vmem:[#allocation2] sm:$0xff]
    %v46 = vld [vmem:[#allocation2 + $0x8] sm:$0xff]
    %v47 = vld [vmem:[#allocation5] sm:$0x1]
    %v48 = vld [vmem:[%s2] sm:$0x1]
    %49 = vadd.xlane.f32.xlu0 %v45
    %v50 = vpop.xlane.xlu0 %49
    %51 = vadd.xlane.f32.xlu0 %v46
    %v52 = vpop.xlane.xlu0 %51
    %v53 = vrcp.pop 128.0
    %v54 = vmul.f32 128.0, %v53
    %v55 = vsub.f32 1.0, %v54
    %v56 = vmul.f32 %v53, %v55
    %v57 = vadd.f32 %v53, %v56
    %vm58 = vweird.f32 %v53
    %v59 = vsel %vm58, %v53, %v57
    %v60 = vmul.f32 %v50, %v59
    %v61 = vmul.f32 %v52, %v59
    %v62 = vsub.f32 %v45, %v60
    %v63 = vsub.f32 %v46, %v61
    %v64 = vmul.f32 %v62, %v62
    %v65 = vmul.f32 %v63, %v63
    %66 = vadd.xlane.f32.xlu0 %v64
    %v67 = vpop.xlane.xlu0 %66
    %68 = vadd.xlane.f32.xlu0 %v65
    %v69 = vpop.xlane.xlu0 %68
    %v70 = vmul.f32 %v67, %v59
    %v71 = vmul.f32 %v69, %v59
    %v72 = vadd.f32 %v70, 1e-12
    %v73 = vadd.f32 %v71, 1e-12
    %v74 = vrsqrt.pop %v72
    %v75 = vmul.f32 %v74, %v72
    %v76 = vmul.f32 %v75, %v74
    %v77 = vmul.f32 0.5, %v76
    %v78 = vsub.f32 1.5, %v77
    %v79 = vmul.f32 %v74, %v78
    %vm80 = vweird.f32 %v72
    %vm81 = vweird.f32 %v74
    %vm82 = vmor %vm80, %vm81
    %v83 = vsel %vm82, %v74, %v79
    %v84 = vrsqrt.pop %v73
    %v85 = vmul.f32 %v84, %v73
    %v86 = vmul.f32 %v85, %v84
    %v87 = vmul.f32 0.5, %v86
    %v88 = vsub.f32 1.5, %v87
    %v89 = vmul.f32 %v84, %v88
    %vm90 = vweird.f32 %v73
    %vm91 = vweird.f32 %v84
    %vm92 = vmor %vm90, %vm91
    %v93 = vsel %vm92, %v84, %v89
    %v94 = vmul.f32 %v62, %v83
    %v95 = vmul.f32 %v63, %v93
    %v97 = vperm.slane %v47, 0
    %v99 = vmul.f32 %v94, %v97
    %v100 = vmul.f32 %v95, %v97
    %v102 = vperm.slane %v48, 0
    %v104 = vadd.f32 %v99, %v102
    %v105 = vadd.f32 %v100, %v102
    %106 = vst [vmem:[#allocation7] sm:$0xff] %v104
    %107 = vst [vmem:[#allocation7 + $0x8] sm:$0xff] %v105
    // Predicated region
    $region22: #{tpu_custom_call.1} parent=1 // pred_check
      _
    $region23: #{tpu_custom_call.1} parent=1 // pred_check_branch
      %109 = sbr.rel (0) target = $region25
    $region24: #{tpu_custom_call.1} parent=1 // pred_region
      %111 = vsyncadd [#allocation4], 0
      %s112 = sshll.u32 [#allocation7], 4
      %s113 = int_to_ptr.vmem [resolvable:$true] %s112
      %s114 = sshll.u32 %s3, 4
      %s115 = int_to_ptr.hbm [resolvable:$true] %s114
      %120 = dma.vmem_to_hbm [thread:$0]  %s113, 256, %s115, [#allocation4], 128, 128, 8
    $region25: #{tpu_custom_call.1} parent=1 // pred_fallthru
      _
    // Predicated region
    $region26: #{tpu_custom_call.1} parent=1 // pred_check
      _
    $region27: #{tpu_custom_call.1} parent=1 // pred_check_branch
      %122 = sbr.rel (0) target = $region29
    $region28: #{tpu_custom_call.1} parent=1 // pred_region
      %124 = dma.done [#allocation4], 256
    $region29: #{tpu_custom_call.1} parent=1 // pred_fallthru
      _
    %125 = vsyncpa [#allocation3], 1
    %126 = vsyncpa [#allocation6], 1
    %127 = vsyncpa [#allocation4], 1

</llo_original>
